<compile_context>
chip_gen: v7x
topology: tpu7x:2x2x1
jax: 0.10.0
libtpu: 0.0.40
codegen_flags: <defaults>
</compile_context>

<pallas_src>
import functools

import jax
import jax.numpy as jnp
from jax import lax
from jax.experimental import pallas as pl
from jax.experimental.pallas import tpu as pltpu


# --------------------------------------------------------------------------- #
# Kernel 1: fused spectral-norm power iteration (weight read from HBM once).
# --------------------------------------------------------------------------- #
def _inv_sigma_kernel(w_ref, inv_sigma_ref, *, n_iters, eps):
    """Power iteration on w_mat = weight.permute(1,0,2,3).reshape(C_out, -1)
    (torch spectral_norm dim=1 semantics for ConvTranspose2d).
    w_ref: VMEM (ch, K) f32; inv_sigma_ref: VMEM (1, 1) f32 output."""
    w = w_ref[...]                                    # (ch, K), resident in VMEM
    ch = w.shape[0]

    def _normalize(x):                                # F.normalize-style clamp: x / max(||x||, eps)
        nrm = jnp.sqrt(jnp.sum(x * x, axis=1, keepdims=True))
        return x / jnp.maximum(nrm, eps)

    def _wT_u(u):                                     # (1, ch) @ W    -> (1, K)
        return lax.dot_general(u, w, (((1,), (0,)), ((), ())),
                               preferred_element_type=jnp.float32)

    def _w_v(v):                                      # (1, K) @ W^T   -> (1, ch)
        return lax.dot_general(v, w, (((1,), (1,)), ((), ())),
                               preferred_element_type=jnp.float32)

    # TODO(synk): torch.nn.utils.spectral_norm carries a stateful `u` buffer and does ONE
    # iteration per forward; here we run a deterministic converged power iteration instead.
    u = jnp.full((1, ch), 1.0 / (ch ** 0.5), dtype=jnp.float32)

    def body(_, u):
        v = _normalize(_wT_u(u))
        return _normalize(_w_v(v))

    u = lax.fori_loop(0, n_iters, body, u)
    v = _normalize(_wT_u(u))
    wv = _w_v(v)                                      # (1, ch) == (W v)^T
    sigma = jnp.sum(u * wv, axis=1, keepdims=True)    # (1, 1)
    inv_sigma_ref[...] = 1.0 / jnp.maximum(sigma, 1e-12)   # guard sigma ~ 0


# --------------------------------------------------------------------------- #
# Kernel 2: N-tiled bf16 GEMM with 1/sigma applied to the small operand.
# --------------------------------------------------------------------------- #
def _gemm_kernel(inv_sigma_ref, x_ref, w_ref, o_ref):
    # inv_sigma_ref : SMEM (1, 1) f32
    # x_ref         : VMEM (B_pad, nz)  f32   (resident across the N grid)
    # w_ref         : VMEM (nz, tn)     bf16  (double-buffered weight tile)
    # o_ref         : VMEM (B_pad, tn)  f32
    inv_s = inv_sigma_ref[0, 0]
    xs = (x_ref[...] * inv_s).astype(jnp.bfloat16)    # scale the small operand, in f32
    o_ref[...] = jnp.dot(xs, w_ref[...],
                         preferred_element_type=jnp.float32).astype(o_ref.dtype)


def _round_up(x, m):
    return ((x + m - 1) // m) * m


@functools.partial(jax.jit, static_argnames=("n_iters", "eps"))
def init_layer_forward(noise, weight, *, n_iters=50, eps=1e-4):
    """noise: (B, nz) or (B, nz, 1, 1); weight: (nz, channel, 4, 4).
    Returns (B, channel, 4, 4) float32 (NCHW), matching InitLayer.forward semantics."""
    B = noise.shape[0]
    nz, channel, kh, kw = weight.shape
    K = nz * kh * kw
    N = channel * kh * kw

    x = noise.reshape(B, -1).astype(jnp.float32)                 # (B, nz)
    B_pad = _round_up(B, 8)                                      # full sublanes / MXU rows
    x_pad = jnp.pad(x, ((0, B_pad - B), (0, 0)))

    # ---- 1) spectral norm: one HBM read of the weight, all iterations in VMEM ----
    w_mat = jnp.transpose(weight, (1, 0, 2, 3)).reshape(channel, K).astype(jnp.float32)
    inv_sigma = pl.pallas_call(
        functools.partial(_inv_sigma_kernel, n_iters=n_iters, eps=eps),
        out_shape=jax.ShapeDtypeStruct((1, 1), jnp.float32),
        in_specs=[pl.BlockSpec((channel, K), lambda: (0, 0))],
        out_specs=pl.BlockSpec((1, 1), lambda: (0, 0)),
        # Full weight resident; cap scoped VMEM below v7x's 64 MiB physical budget.
        compiler_params=pltpu.CompilerParams(vmem_limit_bytes=48 * 1024 * 1024),
    )(w_mat)

    # ---- 2) N-tiled, double-buffered bf16 GEMM ----
    w_flat = weight.reshape(nz, N).astype(jnp.bfloat16)
    tn = min(N, 2048)                                            # lane-dense tile, fits all gens
    grid = (pl.cdiv(N, tn),)
    out_flat = pl.pallas_call(
        _gemm_kernel,
        out_shape=jax.ShapeDtypeStruct((B_pad, N), jnp.float32),
        grid=grid,
        in_specs=[
            pl.BlockSpec(memory_space=pltpu.MemorySpace.SMEM),   # inv_sigma scalar
            pl.BlockSpec((B_pad, nz), lambda j: (0, 0)),         # x: resident, no re-DMA
            pl.BlockSpec((nz, tn), lambda j: (0, j)),            # weight tile (pipelined)
        ],
        out_specs=pl.BlockSpec((B_pad, tn), lambda j: (0, j)),
        compiler_params=pltpu.CompilerParams(
            dimension_semantics=("parallel",)),                  # shards N over v7x's 2 TCs
    )(inv_sigma, x_pad, w_flat)

    return out_flat[:B].reshape(B, channel, kh, kw)


if __name__ == "__main__":
    B, nz, channel = 2, 32, 8   # small shapes; output is (2, 8, 4, 4)

    key = jax.random.PRNGKey(0)
    k_noise, k_w = jax.random.split(key)
    noise = jax.random.normal(k_noise, (B, nz), dtype=jnp.float32)
    # Deterministic synthetic weight (PyTorch shape: (in=nz, out=channel, 4, 4)).
    weight = jax.random.normal(k_w, (nz, channel, 4, 4), dtype=jnp.float32) * 0.05

    out = jax.block_until_ready(init_layer_forward(noise, weight))
    assert out.shape == (B, channel, 4, 4)

    # Pure-JAX reference mirroring the kernel numerics (bf16 GEMM inputs, f32 accumulate).
    def ref_sigma(w, n_iters=50, eps=1e-4):
        nz_, ch, kh, kw = w.shape
        w_mat = jnp.transpose(w, (1, 0, 2, 3)).reshape(ch, nz_ * kh * kw)
        u0 = jnp.full((ch,), 1.0 / jnp.sqrt(ch), dtype=jnp.float32)

        def body(_, u):
            v = w_mat.T @ u
            v = v / jnp.maximum(jnp.linalg.norm(v), eps)
            u = w_mat @ v
            u = u / jnp.maximum(jnp.linalg.norm(u), eps)
            return u

        u = lax.fori_loop(0, n_iters, body, u0)
        v = w_mat.T @ u
        v = v / jnp.maximum(jnp.linalg.norm(v), eps)
        return jnp.dot(u, w_mat @ v)

    sigma = ref_sigma(weight)
    inv_s = 1.0 / jnp.maximum(sigma, 1e-12)
    xs_ref = (noise * inv_s).astype(jnp.bfloat16).astype(jnp.float32)
    w_ref = weight.astype(jnp.bfloat16).astype(jnp.float32)
    ref = jnp.einsum("bn,ncij->bcij", xs_ref, w_ref)

    assert jnp.allclose(out, ref, atol=1e-2, rtol=1e-2), float(jnp.max(jnp.abs(out - ref)))
    print("KERNEL_OK")
</pallas_src>

<mosaic_0001>
module attributes {stable_mosaic.version = 11 : i64} {
  func.func @_inv_sigma_kernel(%arg0: memref<8x512xf32, #tpu.memory_space<vmem>>, %arg1: memref<1x1xf32, #tpu.memory_space<vmem>>) attributes {dimension_semantics = [], scalar_prefetch = 0 : i64, scratch_operands = 0 : i64, tpu.core_type = #tpu.core_type<tc>} {
    %c0 = arith.constant 0 : index
    %c0_0 = arith.constant 0 : index
    %0 = vector.load %arg0[%c0, %c0_0] : memref<8x512xf32, #tpu.memory_space<vmem>>, vector<8x512xf32>
    %cst = arith.constant 0.353553385 : f32
    %1 = vector.broadcast %cst : f32 to vector<1x8xf32>
    %c0_i32 = arith.constant 0 : i32
    %c50_i32 = arith.constant 50 : i32
    %2 = arith.addi %c0_i32, %c50_i32 : i32
    %c1_i32 = arith.constant 1 : i32
    %3 = scf.for %arg2 = %c0_i32 to %2 step %c1_i32 iter_args(%arg3 = %1) -> (vector<1x8xf32>)  : i32 {
      %cst_10 = arith.constant dense<0.000000e+00> : vector<1x512xf32>
      %22 = tpu.matmul %arg3, %0, %cst_10 {dimension_numbers = #tpu.dot_dimension_numbers<[1], [0], [0], [1], [0, 0, 1, 1], [], []>} : vector<1x8xf32>, vector<8x512xf32>, vector<1x512xf32> -> vector<1x512xf32>
      %23 = arith.mulf %22, %22 : vector<1x512xf32>
      %cst_11 = arith.constant dense<0.000000e+00> : vector<1xf32>
      %24 = vector.multi_reduction <add>, %23, %cst_11 [1] : vector<1x512xf32> to vector<1xf32>
      %25 = vector.shape_cast %24 : vector<1xf32> to vector<1x1xf32>
      %26 = math.sqrt %25 : vector<1x1xf32>
      %cst_12 = arith.constant 9.99999974E-5 : f32
      %27 = vector.broadcast %cst_12 : f32 to vector<1x1xf32>
      %28 = arith.maximumf %26, %27 : vector<1x1xf32>
      %29 = vector.broadcast %28 : vector<1x1xf32> to vector<1x512xf32>
      %30 = arith.divf %22, %29 : vector<1x512xf32>
      %cst_13 = arith.constant dense<0.000000e+00> : vector<1x8xf32>
      %31 = tpu.matmul %30, %0, %cst_13 {dimension_numbers = #tpu.dot_dimension_numbers<[1], [1], [0], [0], [0, 0, 1, 0], [], []>} : vector<1x512xf32>, vector<8x512xf32>, vector<1x8xf32> -> vector<1x8xf32>
      %32 = arith.mulf %31, %31 : vector<1x8xf32>
      %cst_14 = arith.constant dense<0.000000e+00> : vector<1xf32>
      %33 = vector.multi_reduction <add>, %32, %cst_14 [1] : vector<1x8xf32> to vector<1xf32>
      %34 = vector.shape_cast %33 : vector<1xf32> to vector<1x1xf32>
      %35 = math.sqrt %34 : vector<1x1xf32>
      %cst_15 = arith.constant 9.99999974E-5 : f32
      %36 = vector.broadcast %cst_15 : f32 to vector<1x1xf32>
      %37 = arith.maximumf %35, %36 : vector<1x1xf32>
      %38 = vector.broadcast %37 : vector<1x1xf32> to vector<1x8xf32>
      %39 = arith.divf %31, %38 : vector<1x8xf32>
      scf.yield %39 : vector<1x8xf32>
    }
    %cst_1 = arith.constant dense<0.000000e+00> : vector<1x512xf32>
    %4 = tpu.matmul %3, %0, %cst_1 {dimension_numbers = #tpu.dot_dimension_numbers<[1], [0], [0], [1], [0, 0, 1, 1], [], []>} : vector<1x8xf32>, vector<8x512xf32>, vector<1x512xf32> -> vector<1x512xf32>
    %5 = arith.mulf %4, %4 : vector<1x512xf32>
    %cst_2 = arith.constant dense<0.000000e+00> : vector<1xf32>
    %6 = vector.multi_reduction <add>, %5, %cst_2 [1] : vector<1x512xf32> to vector<1xf32>
    %7 = vector.shape_cast %6 : vector<1xf32> to vector<1x1xf32>
    %8 = math.sqrt %7 : vector<1x1xf32>
    %cst_3 = arith.constant 9.99999974E-5 : f32
    %9 = vector.broadcast %cst_3 : f32 to vector<1x1xf32>
    %10 = arith.maximumf %8, %9 : vector<1x1xf32>
    %11 = vector.broadcast %10 : vector<1x1xf32> to vector<1x512xf32>
    %12 = arith.divf %4, %11 : vector<1x512xf32>
    %cst_4 = arith.constant dense<0.000000e+00> : vector<1x8xf32>
    %13 = tpu.matmul %12, %0, %cst_4 {dimension_numbers = #tpu.dot_dimension_numbers<[1], [1], [0], [0], [0, 0, 1, 0], [], []>} : vector<1x512xf32>, vector<8x512xf32>, vector<1x8xf32> -> vector<1x8xf32>
    %14 = arith.mulf %3, %13 : vector<1x8xf32>
    %cst_5 = arith.constant dense<0.000000e+00> : vector<1xf32>
    %15 = vector.multi_reduction <add>, %14, %cst_5 [1] : vector<1x8xf32> to vector<1xf32>
    %16 = vector.shape_cast %15 : vector<1xf32> to vector<1x1xf32>
    %cst_6 = arith.constant 9.99999996E-13 : f32
    %17 = vector.broadcast %cst_6 : f32 to vector<1x1xf32>
    %18 = arith.maximumf %16, %17 : vector<1x1xf32>
    %cst_7 = arith.constant 1.000000e+00 : f32
    %19 = vector.broadcast %cst_7 : f32 to vector<1x1xf32>
    %20 = arith.divf %19, %18 : vector<1x1xf32>
    %c0_8 = arith.constant 0 : index
    %c0_9 = arith.constant 0 : index
    %21 = vector.load %arg1[%c0_8, %c0_9] : memref<1x1xf32, #tpu.memory_space<vmem>>, vector<1x1xf32>
    tpu.vector_store %arg1[%c0_8, %c0_9], %20 {strides = array<i32>} : memref<1x1xf32, #tpu.memory_space<vmem>>, vector<1x1xf32>,
    return
  }
}

module attributes {stable_mosaic.version = 11 : i64} {
  func.func @_gemm_kernel(%arg0: i32, %arg1: memref<1x1xf32, #tpu.memory_space<smem>>, %arg2: memref<8x32xf32, #tpu.memory_space<vmem>>, %arg3: memref<32x128xbf16, #tpu.memory_space<vmem>>, %arg4: memref<8x128xf32, #tpu.memory_space<vmem>>) attributes {dimension_semantics = [#tpu.dimension_semantics<parallel>], iteration_bounds = array<i64: 1>, scalar_prefetch = 0 : i64, scratch_operands = 0 : i64, tpu.core_type = #tpu.core_type<tc>, window_params = [{transform_indices = @transform_0, window_bounds = array<i64: 1, 1>}, {pipeline_mode = #tpu.pipeline_mode<synchronous>, transform_indices = @transform_1, window_bounds = array<i64: 8, 32>}, {transform_indices = @transform_2, window_bounds = array<i64: 32, 128>}, {transform_indices = @transform_3, window_bounds = array<i64: 8, 128>}]} {
    %c0 = arith.constant 0 : index
    %c0_0 = arith.constant 0 : index
    %0 = memref.load %arg1[%c0, %c0_0] : memref<1x1xf32, #tpu.memory_space<smem>>
    %c0_1 = arith.constant 0 : index
    %c0_2 = arith.constant 0 : index
    %1 = vector.load %arg2[%c0_1, %c0_2] : memref<8x32xf32, #tpu.memory_space<vmem>>, vector<8x32xf32>
    %2 = vector.broadcast %0 : f32 to vector<8x32xf32>
    %3 = arith.mulf %1, %2 : vector<8x32xf32>
    %4 = arith.truncf %3 : vector<8x32xf32> to vector<8x32xbf16>
    %c0_3 = arith.constant 0 : index
    %c0_4 = arith.constant 0 : index
    %5 = vector.load %arg3[%c0_3, %c0_4] : memref<32x128xbf16, #tpu.memory_space<vmem>>, vector<32x128xbf16>
    %cst = arith.constant dense<0.000000e+00> : vector<8x128xf32>
    %6 = tpu.matmul %4, %5, %cst {dimension_numbers = #tpu.dot_dimension_numbers<[1], [0], [0], [1], [0, 0, 1, 1], [], []>} : vector<8x32xbf16>, vector<32x128xbf16>, vector<8x128xf32> -> vector<8x128xf32>
    %c0_5 = arith.constant 0 : index
    %c0_6 = arith.constant 0 : index
    %7 = vector.load %arg4[%c0_5, %c0_6] : memref<8x128xf32, #tpu.memory_space<vmem>>, vector<8x128xf32>
    tpu.vector_store %arg4[%c0_5, %c0_6], %6 {strides = array<i32>} : memref<8x128xf32, #tpu.memory_space<vmem>>, vector<8x128xf32>,
    return
  }
  func.func @transform_0(%arg0: i32) -> (i32, i32) {
    %c0_i32 = arith.constant 0 : i32
    %c0_i32_0 = arith.constant 0 : i32
    %c0_i32_1 = arith.constant 0 : i32
    return %c0_i32, %c0_i32_0 : i32, i32
  }
  func.func @transform_1(%arg0: i32) -> (i32, i32) {
    %c0_i32 = arith.constant 0 : i32
    %c0_i32_0 = arith.constant 0 : i32
    %c0_i32_1 = arith.constant 0 : i32
    return %c0_i32, %c0_i32_0 : i32, i32
  }
  func.func @transform_2(%arg0: i32) -> (i32, i32) {
    %c0_i32 = arith.constant 0 : i32
    %c0_i32_0 = arith.constant 0 : i32
    return %c0_i32, %arg0 : i32, i32
  }
  func.func @transform_3(%arg0: i32) -> (i32, i32) {
    %c0_i32 = arith.constant 0 : i32
    %c0_i32_0 = arith.constant 0 : i32
    return %c0_i32, %arg0 : i32, i32
  }
}

</mosaic_0001>

<llo_original>
// kernel: init_layer_forward.3
$region0: #{init_layer_forward.3}
  #allocation0 [shape = 'u32[]', space=smem, size = 0x4, offset = 0x4, fixed_abs, tag = 'smem constant byte address 0x4 - core index']
  #allocation1 [shape = 'u32[144,128]{1,0:T(1,128)}', space=vmem, size = 0x12000, scoped, tag = 'internal scratch']
  #allocation2 [shape = 'f32[1,1]{1,0:T(1,128)S(6)}', space=smem, size = 0x200, scoped, tag = 'scoped memory for init_layer_forward.3']
  %s0 = inlined_call_operand.<no memory space> [shape: f32[1,1], index: 0, kind: input, shape index: {}]
  %s1 = inlined_call_operand.vmem [shape: f32[8,32], index: 1, kind: input, shape index: {}]
  %s2 = inlined_call_operand.vmem [shape: bf16[32,128], index: 2, kind: input, shape index: {}]
  %s3 = inlined_call_operand.vmem [shape: f32[8,128], index: 3, kind: output, shape index: {}]
  %s4 = sld [smem:[#allocation0]]
  $region22: #{init_layer_forward.3} parent=0
    _
  %s6 = ssub.s32 1, %s4
  %s7 = scalar_select 0, %s6, %s4
  %8 = sst [smem:[#allocation2]] %s0
  // Predicated region
  $region2: #{init_layer_forward.3} parent=0 // pred_check
    _
  $region3: #{init_layer_forward.3} parent=0 // pred_check_branch
    %10 = sbr.rel (0) target = $region5
  $region4: #{init_layer_forward.3} parent=0 // pred_region
    _
  $region5: #{init_layer_forward.3} parent=0 // pred_fallthru
    _
  // Predicated region
  $region6: #{init_layer_forward.3} parent=0 // pred_check
    _
  $region7: #{init_layer_forward.3} parent=0 // pred_check_branch
    %12 = sbr.rel (0) target = $region9
  $region8: #{init_layer_forward.3} parent=0 // pred_region
    _
  $region9: #{init_layer_forward.3} parent=0 // pred_fallthru
    _
  // Predicated region
  $region10: #{init_layer_forward.3} parent=0 // pred_check
    _
  $region11: #{init_layer_forward.3} parent=0 // pred_check_branch
    %14 = sbr.rel (0) target = $region13
  $region12: #{init_layer_forward.3} parent=0 // pred_region
    _
  $region13: #{init_layer_forward.3} parent=0 // pred_fallthru
    _
  %s16 = sld [smem:[#allocation2]]
  %v17 = vld [vmem:[%s1] sm:$0xff]
  %v18 = vstv %s16
  %v19 = vmul.f32 %v17, %v18
  %v20 = vpack.c.bf16 %v19, %v19
  %v21 = vld [vmem:[%s2] sm:$0xf]
  %v22 = vld [vmem:[%s2 + $0x4] sm:$0xf]
  %v23 = vld [vmem:[%s2 + $0x8] sm:$0xf]
  %v24 = vld [vmem:[%s2 + $0xc] sm:$0xf]
  %v29 = vunpack.c.l.b16 %v21
  %v30 = vunpack.c.l.b16 %v22
  %v31 = vunpack.c.l.b16 %v23
  %v32 = vunpack.c.l.b16 %v24
  %v33 = vpack.c.b16 %v30, %v29
  %v34 = vpack.c.b16 %v32, %v31
  %vm37 = vcmask 261120
  %v39 = vsel %vm37, %v20, 0
  %41 = vmatprep.subr.bf16.mxu0 0
  %42 = vmatpush1.bf16.msra.mxu0 %v33
  %43 = vmatprep.subr.bf16.mxu0 0
  %44 = vmatpush1.bf16.msra.mxu0 %v34
  %45 = vmatprep.subr.bf16.mxu0 0
  %46 = vmatpush1.bf16.msra.mxu0 0
  %47 = vmatprep.subr.bf16.mxu0 0
  %48 = vmatpush1.bf16.msra.mxu0 0
  %49 = vmatprep.subr.bf16.mxu0 0
  %50 = vmatpush1.bf16.msra.mxu0 0
  %51 = vmatprep.subr.bf16.mxu0 0
  %52 = vmatpush1.bf16.msra.mxu0 0
  %53 = vmatprep.subr.bf16.mxu0 0
  %54 = vmatpush1.bf16.msra.mxu0 0
  %55 = vmatprep.subr.bf16.mxu0 0
  %56 = vmatpush1.bf16.msra.mxu0 0
  %57 = vmatprep.subr.bf16.mxu0 0
  %58 = vmatpush1.bf16.msra.mxu0 0
  %59 = vmatprep.subr.bf16.mxu0 0
  %60 = vmatpush1.bf16.msra.mxu0 0
  %61 = vmatprep.subr.bf16.mxu0 0
  %62 = vmatpush1.bf16.msra.mxu0 0
  %63 = vmatprep.subr.bf16.mxu0 0
  %64 = vmatpush1.bf16.msra.mxu0 0
  %65 = vmatprep.subr.bf16.mxu0 0
  %66 = vmatpush1.bf16.msra.mxu0 0
  %67 = vmatprep.subr.bf16.mxu0 0
  %68 = vmatpush1.bf16.msra.mxu0 0
  %69 = vmatprep.subr.bf16.mxu0 0
  %70 = vmatpush1.bf16.msra.mxu0 0
  %71 = vmatprep.subr.bf16.mxu0 0
  %72 = vmatpush1.bf16.msra.mxu0 0
  %73 = vmatprep.mubr.bf16.mxu0 0
  %74 = vmatmul.mubr.bf16.gmra.mrb[0].mxu0 %v39
  %v75 = vpop.f32.mrb[0].mxu0
  %v76 = vadd.f32 0.0, %v75
  %v77 = vpop.f32.mrb[0].mxu0
  %v78 = vpop.f32.mrb[0].mxu0
  %v79 = vpop.f32.mrb[0].mxu0
  %80 = vdwg.mxu0
  %81 = vst [vmem:[%s3] sm:$0xff] %v76
  // Predicated region
  $region14: #{init_layer_forward.3} parent=0 // pred_check
    _
  $region15: #{init_layer_forward.3} parent=0 // pred_check_branch
    %83 = sbr.rel (0) target = $region17
  $region16: #{init_layer_forward.3} parent=0 // pred_region
    _
  $region17: #{init_layer_forward.3} parent=0 // pred_fallthru
    _
  // Predicated region
  $region18: #{init_layer_forward.3} parent=0 // pred_check
    _
  $region19: #{init_layer_forward.3} parent=0 // pred_check_branch
    %85 = sbr.rel (0) target = $region21
  $region20: #{init_layer_forward.3} parent=0 // pred_region
    _
  $region21: #{init_layer_forward.3} parent=0 // pred_fallthru
    _

// kernel: init_layer_forward.2
$region0: #{init_layer_forward.2}
  #allocation0 [shape = 'u32[]', space=smem, size = 0x4, offset = 0x4, fixed_abs, tag = 'smem constant byte address 0x4 - core index']
  #allocation1 [shape = 'u32[144,128]{1,0:T(1,128)}', space=vmem, size = 0x12000, scoped, tag = 'internal scratch']
  %s0 = inlined_call_operand.vmem [shape: f32[8,512], index: 0, kind: input, shape index: {}]
  %s1 = inlined_call_operand.hbm [shape: f32[1,1], index: 1, kind: output, shape index: {}]
  %s2 = sld [smem:[#allocation0]]
  $region21: #{init_layer_forward.2} parent=0
    _
  %s4 = ssub.s32 1, %s2
  %s5 = scalar_select 0, %s4, %s2
  $region1: #{init_layer_forward.2} parent=0
    #allocation2 [shape = 'u8[512]{0}', space=vmem, size = 0x400, scoped, tag = 'output window, operand 0, single buffered']
    #allocation3 [shape = 's32[1]{0}', space=sflag, size = 0x4, scoped, tag = 'scoped memory for init_layer_forward.2']
    %6 = vsyncpa [#allocation3], 0
    // Predicated region
    $region2: #{init_layer_forward.2} parent=1 // pred_check
      _
    $region3: #{init_layer_forward.2} parent=1 // pred_check_branch
      %8 = sbr.rel (0) target = $region5
    $region4: #{init_layer_forward.2} parent=1 // pred_region
      _
    $region5: #{init_layer_forward.2} parent=1 // pred_fallthru
      _
    %v9 = vld [vmem:[%s0] sm:$0xff]
    %v10 = vld [vmem:[%s0 + $0x8] sm:$0xff]
    %v11 = vld [vmem:[%s0 + $0x10] sm:$0xff]
    %v12 = vld [vmem:[%s0 + $0x18] sm:$0xff]
    loop: start=0, step=1, limit=50
    $region6: #{init_layer_forward.2} parent=1 // loop_pre_header
      _
    $region7: #{init_layer_forward.2} parent=1 // loop_header
      %s14 = sphi 0, %s18
      %p15 = scmp.ge.s32.totalorder %s14, 50
      %v19 = vphi 0.35355338, %v347
    $region8: #{init_layer_forward.2} parent=1 // loop_header_branch
      %17 = sbr.rel (%p15) target = $region12
    $region9: #{init_layer_forward.2} parent=1 // loop_body
      %vm20 = vcmask 64512
      %v22 = vsel %vm20, %v19, 0
      %24 = vmatprep.subr.mxu0 %v10
      %25 = vmatpush1.msra.mxu0 %v9
      %26 = vmatprep.subr.mxu0 0.0
      %27 = vmatpush1.msra.mxu0 0.0
      %28 = vmatprep.subr.mxu0 0.0
      %29 = vmatpush1.msra.mxu0 0.0
      %30 = vmatprep.subr.mxu0 0.0
      %31 = vmatpush1.msra.mxu0 0.0
      %32 = vmatprep.subr.mxu0 0.0
      %33 = vmatpush1.msra.mxu0 0.0
      %34 = vmatprep.subr.mxu0 0.0
      %35 = vmatpush1.msra.mxu0 0.0
      %36 = vmatprep.subr.mxu0 0.0
      %37 = vmatpush1.msra.mxu0 0.0
      %38 = vmatprep.subr.mxu0 0.0
      %39 = vmatpush1.msra.mxu0 0.0
      %40 = vmatprep.subr.mxu0 0.0
      %41 = vmatpush1.msra.mxu0 0.0
      %42 = vmatprep.subr.mxu0 0.0
      %43 = vmatpush1.msra.mxu0 0.0
      %44 = vmatprep.subr.mxu0 0.0
      %45 = vmatpush1.msra.mxu0 0.0
      %46 = vmatprep.subr.mxu0 0.0
      %47 = vmatpush1.msra.mxu0 0.0
      %48 = vmatprep.subr.mxu0 0.0
      %49 = vmatpush1.msra.mxu0 0.0
      %50 = vmatprep.subr.mxu0 0.0
      %51 = vmatpush1.msra.mxu0 0.0
      %52 = vmatprep.subr.mxu0 0.0
      %53 = vmatpush1.msra.mxu0 0.0
      %54 = vmatprep.subr.mxu0 0.0
      %55 = vmatpush1.msra.mxu0 0.0
      %56 = vmatprep.subr.mxu0 0.0
      %57 = vmatpush1.msra.mxu0 0.0
      %58 = vmatprep.subr.mxu0 0.0
      %59 = vmatpush1.msra.mxu0 0.0
      %60 = vmatprep.subr.mxu0 0.0
      %61 = vmatpush1.msra.mxu0 0.0
      %62 = vmatprep.subr.mxu0 0.0
      %63 = vmatpush1.msra.mxu0 0.0
      %64 = vmatprep.subr.mxu0 0.0
      %65 = vmatpush1.msra.mxu0 0.0
      %66 = vmatprep.subr.mxu0 0.0
      %67 = vmatpush1.msra.mxu0 0.0
      %68 = vmatprep.subr.mxu0 0.0
      %69 = vmatpush1.msra.mxu0 0.0
      %70 = vmatprep.subr.mxu0 0.0
      %71 = vmatpush1.msra.mxu0 0.0
      %72 = vmatprep.subr.mxu0 0.0
      %73 = vmatpush1.msra.mxu0 0.0
      %74 = vmatprep.subr.mxu0 0.0
      %75 = vmatpush1.msra.mxu0 0.0
      %76 = vmatprep.subr.mxu0 0.0
      %77 = vmatpush1.msra.mxu0 0.0
      %78 = vmatprep.subr.mxu0 0.0
      %79 = vmatpush1.msra.mxu0 0.0
      %80 = vmatprep.subr.mxu0 0.0
      %81 = vmatpush1.msra.mxu0 0.0
      %82 = vmatprep.subr.mxu0 0.0
      %83 = vmatpush1.msra.mxu0 0.0
      %84 = vmatprep.subr.mxu0 0.0
      %85 = vmatpush1.msra.mxu0 0.0
      %86 = vmatprep.subr.mxu0 0.0
      %87 = vmatpush1.msra.mxu0 0.0
      %88 = vmatprep.mubr.f32.mxu0 0.0
      %89 = vmatmul.mubr.f32.gmra.mrb[0].mxu0 %v22
      %v90 = vpop.f32.mrb[0].mxu0
      %v91 = vadd.f32 0.0, %v90
      %v92 = vpop.f32.mrb[0].mxu0
      %v93 = vadd.f32 0.0, %v92
      %94 = vdwg.mxu0
      %95 = vmatprep.subr.mxu0 %v12
      %96 = vmatpush1.msra.mxu0 %v11
      %97 = vmatprep.subr.mxu0 0.0
      %98 = vmatpush1.msra.mxu0 0.0
      %99 = vmatprep.subr.mxu0 0.0
      %100 = vmatpush1.msra.mxu0 0.0
      %101 = vmatprep.subr.mxu0 0.0
      %102 = vmatpush1.msra.mxu0 0.0
      %103 = vmatprep.subr.mxu0 0.0
      %104 = vmatpush1.msra.mxu0 0.0
      %105 = vmatprep.subr.mxu0 0.0
      %106 = vmatpush1.msra.mxu0 0.0
      %107 = vmatprep.subr.mxu0 0.0
      %108 = vmatpush1.msra.mxu0 0.0
      %109 = vmatprep.subr.mxu0 0.0
      %110 = vmatpush1.msra.mxu0 0.0
      %111 = vmatprep.subr.mxu0 0.0
      %112 = vmatpush1.msra.mxu0 0.0
      %113 = vmatprep.subr.mxu0 0.0
      %114 = vmatpush1.msra.mxu0 0.0
      %115 = vmatprep.subr.mxu0 0.0
      %116 = vmatpush1.msra.mxu0 0.0
      %117 = vmatprep.subr.mxu0 0.0
      %118 = vmatpush1.msra.mxu0 0.0
      %119 = vmatprep.subr.mxu0 0.0
      %120 = vmatpush1.msra.mxu0 0.0
      %121 = vmatprep.subr.mxu0 0.0
      %122 = vmatpush1.msra.mxu0 0.0
      %123 = vmatprep.subr.mxu0 0.0
      %124 = vmatpush1.msra.mxu0 0.0
      %125 = vmatprep.subr.mxu0 0.0
      %126 = vmatpush1.msra.mxu0 0.0
      %127 = vmatprep.subr.mxu0 0.0
      %128 = vmatpush1.msra.mxu0 0.0
      %129 = vmatprep.subr.mxu0 0.0
      %130 = vmatpush1.msra.mxu0 0.0
      %131 = vmatprep.subr.mxu0 0.0
      %132 = vmatpush1.msra.mxu0 0.0
      %133 = vmatprep.subr.mxu0 0.0
      %134 = vmatpush1.msra.mxu0 0.0
      %135 = vmatprep.subr.mxu0 0.0
      %136 = vmatpush1.msra.mxu0 0.0
      %137 = vmatprep.subr.mxu0 0.0
      %138 = vmatpush1.msra.mxu0 0.0
      %139 = vmatprep.subr.mxu0 0.0
      %140 = vmatpush1.msra.mxu0 0.0
      %141 = vmatprep.subr.mxu0 0.0
      %142 = vmatpush1.msra.mxu0 0.0
      %143 = vmatprep.subr.mxu0 0.0
      %144 = vmatpush1.msra.mxu0 0.0
      %145 = vmatprep.subr.mxu0 0.0
      %146 = vmatpush1.msra.mxu0 0.0
      %147 = vmatprep.subr.mxu0 0.0
      %148 = vmatpush1.msra.mxu0 0.0
      %149 = vmatprep.subr.mxu0 0.0
      %150 = vmatpush1.msra.mxu0 0.0
      %151 = vmatprep.subr.mxu0 0.0
      %152 = vmatpush1.msra.mxu0 0.0
      %153 = vmatprep.subr.mxu0 0.0
      %154 = vmatpush1.msra.mxu0 0.0
      %155 = vmatprep.subr.mxu0 0.0
      %156 = vmatpush1.msra.mxu0 0.0
      %157 = vmatprep.subr.mxu0 0.0
      %158 = vmatpush1.msra.mxu0 0.0
      %159 = vmatprep.mubr.f32.mxu0 0.0
      %160 = vmatmul.mubr.f32.gmra.mrb[0].mxu0 %v22
      %v161 = vpop.f32.mrb[0].mxu0
      %v162 = vadd.f32 0.0, %v161
      %v163 = vpop.f32.mrb[0].mxu0
      %v164 = vadd.f32 0.0, %v163
      %165 = vdwg.mxu0
      %v166 = vmul.f32 %v91, %v91
      %v167 = vmul.f32 %v93, %v93
      %v168 = vmul.f32 %v162, %v162
      %v169 = vmul.f32 %v164, %v164
      %vm170 = vcmask 1040384
      %v171 = vsel %vm170, %v166, 0.0
      %v172 = vsel %vm170, %v167, 0.0
      %v173 = vadd.f32 %v171, %v172
      %v174 = vsel %vm170, %v168, 0.0
      %v175 = vadd.f32 %v173, %v174
      %v176 = vsel %vm170, %v169, 0.0
      %v177 = vadd.f32 %v175, %v176
      %178 = vadd.xlane.f32.xlu0 %v177
      %v179 = vpop.xlane.xlu0 %178
      %v180 = vrsqrt.pop %v179
      %v181 = vmul.f32 %v179, %v180
      %vm182 = vcmp.eq.f32.partialorder %v179, inf
      %v183 = vsel %vm182, %v179, %v181
      %vm184 = vcmp.eq.f32.partialorder %v179, 0.0
      %v185 = vand.u32 %v179, 2147483648
      %v186 = vsel %vm184, %v185, %v183
      %v187 = vmax.f32 %v186, 0.0001
      %v188 = vrcp.pop %v187
      %v189 = vmul.f32 %v91, %v188
      %v190 = vmul.f32 %v93, %v188
      %v191 = vmul.f32 %v162, %v188
      %v192 = vmul.f32 %v164, %v188
      %193 = vmatprep.subr.mxu0 %v10
      %194 = vmatpush1.xpose.msra.mxu0 %v9
      %195 = vmatprep.subr.mxu0 0.0
      %196 = vmatpush1.xpose.msra.mxu0 0.0
      %197 = vmatprep.subr.mxu0 0.0
      %198 = vmatpush1.xpose.msra.mxu0 0.0
      %199 = vmatprep.subr.mxu0 0.0
      %200 = vmatpush1.xpose.msra.mxu0 0.0
      %201 = vmatprep.subr.mxu0 0.0
      %202 = vmatpush1.xpose.msra.mxu0 0.0
      %203 = vmatprep.subr.mxu0 0.0
      %204 = vmatpush1.xpose.msra.mxu0 0.0
      %205 = vmatprep.subr.mxu0 0.0
      %206 = vmatpush1.xpose.msra.mxu0 0.0
      %207 = vmatprep.subr.mxu0 0.0
      %208 = vmatpush1.xpose.msra.mxu0 0.0
      %209 = vmatprep.subr.mxu0 0.0
      %210 = vmatpush1.xpose.msra.mxu0 0.0
      %211 = vmatprep.subr.mxu0 0.0
      %212 = vmatpush1.xpose.msra.mxu0 0.0
      %213 = vmatprep.subr.mxu0 0.0
      %214 = vmatpush1.xpose.msra.mxu0 0.0
      %215 = vmatprep.subr.mxu0 0.0
      %216 = vmatpush1.xpose.msra.mxu0 0.0
      %217 = vmatprep.subr.mxu0 0.0
      %218 = vmatpush1.xpose.msra.mxu0 0.0
      %219 = vmatprep.subr.mxu0 0.0
      %220 = vmatpush1.xpose.msra.mxu0 0.0
      %221 = vmatprep.subr.mxu0 0.0
      %222 = vmatpush1.xpose.msra.mxu0 0.0
      %223 = vmatprep.subr.mxu0 0.0
      %224 = vmatpush1.xpose.msra.mxu0 0.0
      %225 = vmatprep.subr.mxu0 0.0
      %226 = vmatpush1.xpose.msra.mxu0 0.0
      %227 = vmatprep.subr.mxu0 0.0
      %228 = vmatpush1.xpose.msra.mxu0 0.0
      %229 = vmatprep.subr.mxu0 0.0
      %230 = vmatpush1.xpose.msra.mxu0 0.0
      %231 = vmatprep.subr.mxu0 0.0
      %232 = vmatpush1.xpose.msra.mxu0 0.0
      %233 = vmatprep.subr.mxu0 0.0
      %234 = vmatpush1.xpose.msra.mxu0 0.0
      %235 = vmatprep.subr.mxu0 0.0
      %236 = vmatpush1.xpose.msra.mxu0 0.0
      %237 = vmatprep.subr.mxu0 0.0
      %238 = vmatpush1.xpose.msra.mxu0 0.0
      %239 = vmatprep.subr.mxu0 0.0
      %240 = vmatpush1.xpose.msra.mxu0 0.0
      %241 = vmatprep.subr.mxu0 0.0
      %242 = vmatpush1.xpose.msra.mxu0 0.0
      %243 = vmatprep.subr.mxu0 0.0
      %244 = vmatpush1.xpose.msra.mxu0 0.0
      %245 = vmatprep.subr.mxu0 0.0
      %246 = vmatpush1.xpose.msra.mxu0 0.0
      %247 = vmatprep.subr.mxu0 0.0
      %248 = vmatpush1.xpose.msra.mxu0 0.0
      %249 = vmatprep.subr.mxu0 0.0
      %250 = vmatpush1.xpose.msra.mxu0 0.0
      %251 = vmatprep.subr.mxu0 0.0
      %252 = vmatpush1.xpose.msra.mxu0 0.0
      %253 = vmatprep.subr.mxu0 0.0
      %254 = vmatpush1.xpose.msra.mxu0 0.0
      %255 = vmatprep.subr.mxu0 0.0
      %256 = vmatpush1.xpose.msra.mxu0 0.0
      %257 = vmatprep.mubr.f32.mxu0 %v190
      %258 = vmatmul.mubr.f32.gmra.mrb[0].mxu0 %v189
      %v259 = vpop.f32.mrb[0].mxu0
      %v260 = vadd.f32 0.0, %v259
      %v261 = vpop.f32.mrb[0].mxu0
      %262 = vdwg.mxu0
      %263 = vmatprep.subr.mxu0 %v12
      %264 = vmatpush1.xpose.msra.mxu0 %v11
      %265 = vmatprep.subr.mxu0 0.0
      %266 = vmatpush1.xpose.msra.mxu0 0.0
      %267 = vmatprep.subr.mxu0 0.0
      %268 = vmatpush1.xpose.msra.mxu0 0.0
      %269 = vmatprep.subr.mxu0 0.0
      %270 = vmatpush1.xpose.msra.mxu0 0.0
      %271 = vmatprep.subr.mxu0 0.0
      %272 = vmatpush1.xpose.msra.mxu0 0.0
      %273 = vmatprep.subr.mxu0 0.0
      %274 = vmatpush1.xpose.msra.mxu0 0.0
      %275 = vmatprep.subr.mxu0 0.0
      %276 = vmatpush1.xpose.msra.mxu0 0.0
      %277 = vmatprep.subr.mxu0 0.0
      %278 = vmatpush1.xpose.msra.mxu0 0.0
      %279 = vmatprep.subr.mxu0 0.0
      %280 = vmatpush1.xpose.msra.mxu0 0.0
      %281 = vmatprep.subr.mxu0 0.0
      %282 = vmatpush1.xpose.msra.mxu0 0.0
      %283 = vmatprep.subr.mxu0 0.0
      %284 = vmatpush1.xpose.msra.mxu0 0.0
      %285 = vmatprep.subr.mxu0 0.0
      %286 = vmatpush1.xpose.msra.mxu0 0.0
      %287 = vmatprep.subr.mxu0 0.0
      %288 = vmatpush1.xpose.msra.mxu0 0.0
      %289 = vmatprep.subr.mxu0 0.0
      %290 = vmatpush1.xpose.msra.mxu0 0.0
      %291 = vmatprep.subr.mxu0 0.0
      %292 = vmatpush1.xpose.msra.mxu0 0.0
      %293 = vmatprep.subr.mxu0 0.0
      %294 = vmatpush1.xpose.msra.mxu0 0.0
      %295 = vmatprep.subr.mxu0 0.0
      %296 = vmatpush1.xpose.msra.mxu0 0.0
      %297 = vmatprep.subr.mxu0 0.0
      %298 = vmatpush1.xpose.msra.mxu0 0.0
      %299 = vmatprep.subr.mxu0 0.0
      %300 = vmatpush1.xpose.msra.mxu0 0.0
      %301 = vmatprep.subr.mxu0 0.0
      %302 = vmatpush1.xpose.msra.mxu0 0.0
      %303 = vmatprep.subr.mxu0 0.0
      %304 = vmatpush1.xpose.msra.mxu0 0.0
      %305 = vmatprep.subr.mxu0 0.0
      %306 = vmatpush1.xpose.msra.mxu0 0.0
      %307 = vmatprep.subr.mxu0 0.0
      %308 = vmatpush1.xpose.msra.mxu0 0.0
      %309 = vmatprep.subr.mxu0 0.0
      %310 = vmatpush1.xpose.msra.mxu0 0.0
      %311 = vmatprep.subr.mxu0 0.0
      %312 = vmatpush1.xpose.msra.mxu0 0.0
      %313 = vmatprep.subr.mxu0 0.0
      %314 = vmatpush1.xpose.msra.mxu0 0.0
      %315 = vmatprep.subr.mxu0 0.0
      %316 = vmatpush1.xpose.msra.mxu0 0.0
      %317 = vmatprep.subr.mxu0 0.0
      %318 = vmatpush1.xpose.msra.mxu0 0.0
      %319 = vmatprep.subr.mxu0 0.0
      %320 = vmatpush1.xpose.msra.mxu0 0.0
      %321 = vmatprep.subr.mxu0 0.0
      %322 = vmatpush1.xpose.msra.mxu0 0.0
      %323 = vmatprep.subr.mxu0 0.0
      %324 = vmatpush1.xpose.msra.mxu0 0.0
      %325 = vmatprep.subr.mxu0 0.0
      %326 = vmatpush1.xpose.msra.mxu0 0.0
      %327 = vmatprep.mubr.f32.mxu0 %v192
      %328 = vmatmul.mubr.f32.gmra.mrb[0].mxu0 %v191
      %v329 = vpop.f32.mrb[0].mxu0
      %v330 = vadd.f32 %v260, %v329
      %v331 = vpop.f32.mrb[0].mxu0
      %332 = vdwg.mxu0
      %v333 = vmul.f32 %v330, %v330
      %vm334 = vcmask 57344
      %v335 = vsel %vm334, %v333, 0.0
      %336 = vadd.xlane.f32.xlu0 %v335
      %v337 = vpop.xlane.xlu0 %336
      %v338 = vrsqrt.pop %v337
      %v339 = vmul.f32 %v337, %v338
      %vm340 = vcmp.eq.f32.partialorder %v337, inf
      %v341 = vsel %vm340, %v337, %v339
      %vm342 = vcmp.eq.f32.partialorder %v337, 0.0
      %v343 = vand.u32 %v337, 2147483648
      %v344 = vsel %vm342, %v343, %v341
      %v345 = vmax.f32 %v344, 0.0001
      %v346 = vrcp.pop %v345
      %v347 = vmul.f32 %v330, %v346
    $region10: #{init_layer_forward.2} parent=1 // loop_footer
      %s18 = sadd.s32 1, %s14
    $region11: #{init_layer_forward.2} parent=1 // loop_footer_branch
      %13 = sbr.rel target = $region7
    $region12: #{init_layer_forward.2} parent=1 // loop_exit
      _
    %vm348 = vcmask 64512
    %v350 = vsel %vm348, %v19, 0
    %352 = vmatprep.subr.mxu0 %v10
    %353 = vmatpush1.msra.mxu0 %v9
    %354 = vmatprep.subr.mxu0 0.0
    %355 = vmatpush1.msra.mxu0 0.0
    %356 = vmatprep.subr.mxu0 0.0
    %357 = vmatpush1.msra.mxu0 0.0
    %358 = vmatprep.subr.mxu0 0.0
    %359 = vmatpush1.msra.mxu0 0.0
    %360 = vmatprep.subr.mxu0 0.0
    %361 = vmatpush1.msra.mxu0 0.0
    %362 = vmatprep.subr.mxu0 0.0
    %363 = vmatpush1.msra.mxu0 0.0
    %364 = vmatprep.subr.mxu0 0.0
    %365 = vmatpush1.msra.mxu0 0.0
    %366 = vmatprep.subr.mxu0 0.0
    %367 = vmatpush1.msra.mxu0 0.0
    %368 = vmatprep.subr.mxu0 0.0
    %369 = vmatpush1.msra.mxu0 0.0
    %370 = vmatprep.subr.mxu0 0.0
    %371 = vmatpush1.msra.mxu0 0.0
    %372 = vmatprep.subr.mxu0 0.0
    %373 = vmatpush1.msra.mxu0 0.0
    %374 = vmatprep.subr.mxu0 0.0
    %375 = vmatpush1.msra.mxu0 0.0
    %376 = vmatprep.subr.mxu0 0.0
    %377 = vmatpush1.msra.mxu0 0.0
    %378 = vmatprep.subr.mxu0 0.0
    %379 = vmatpush1.msra.mxu0 0.0
    %380 = vmatprep.subr.mxu0 0.0
    %381 = vmatpush1.msra.mxu0 0.0
    %382 = vmatprep.subr.mxu0 0.0
    %383 = vmatpush1.msra.mxu0 0.0
    %384 = vmatprep.subr.mxu0 0.0
    %385 = vmatpush1.msra.mxu0 0.0
    %386 = vmatprep.subr.mxu0 0.0
    %387 = vmatpush1.msra.mxu0 0.0
    %388 = vmatprep.subr.mxu0 0.0
    %389 = vmatpush1.msra.mxu0 0.0
    %390 = vmatprep.subr.mxu0 0.0
    %391 = vmatpush1.msra.mxu0 0.0
    %392 = vmatprep.subr.mxu0 0.0
    %393 = vmatpush1.msra.mxu0 0.0
    %394 = vmatprep.subr.mxu0 0.0
    %395 = vmatpush1.msra.mxu0 0.0
    %396 = vmatprep.subr.mxu0 0.0
    %397 = vmatpush1.msra.mxu0 0.0
    %398 = vmatprep.subr.mxu0 0.0
    %399 = vmatpush1.msra.mxu0 0.0
    %400 = vmatprep.subr.mxu0 0.0
    %401 = vmatpush1.msra.mxu0 0.0
    %402 = vmatprep.subr.mxu0 0.0
    %403 = vmatpush1.msra.mxu0 0.0
    %404 = vmatprep.subr.mxu0 0.0
    %405 = vmatpush1.msra.mxu0 0.0
    %406 = vmatprep.subr.mxu0 0.0
    %407 = vmatpush1.msra.mxu0 0.0
    %408 = vmatprep.subr.mxu0 0.0
    %409 = vmatpush1.msra.mxu0 0.0
    %410 = vmatprep.subr.mxu0 0.0
    %411 = vmatpush1.msra.mxu0 0.0
    %412 = vmatprep.subr.mxu0 0.0
    %413 = vmatpush1.msra.mxu0 0.0
    %414 = vmatprep.subr.mxu0 0.0
    %415 = vmatpush1.msra.mxu0 0.0
    %416 = vmatprep.mubr.f32.mxu0 0.0
    %417 = vmatmul.mubr.f32.gmra.mrb[0].mxu0 %v350
    %v418 = vpop.f32.mrb[0].mxu0
    %v419 = vadd.f32 0.0, %v418
    %v420 = vpop.f32.mrb[0].mxu0
    %v421 = vadd.f32 0.0, %v420
    %422 = vdwg.mxu0
    %423 = vmatprep.subr.mxu0 %v12
    %424 = vmatpush1.msra.mxu0 %v11
    %425 = vmatprep.subr.mxu0 0.0
    %426 = vmatpush1.msra.mxu0 0.0
    %427 = vmatprep.subr.mxu0 0.0
    %428 = vmatpush1.msra.mxu0 0.0
    %429 = vmatprep.subr.mxu0 0.0
    %430 = vmatpush1.msra.mxu0 0.0
    %431 = vmatprep.subr.mxu0 0.0
    %432 = vmatpush1.msra.mxu0 0.0
    %433 = vmatprep.subr.mxu0 0.0
    %434 = vmatpush1.msra.mxu0 0.0
    %435 = vmatprep.subr.mxu0 0.0
    %436 = vmatpush1.msra.mxu0 0.0
    %437 = vmatprep.subr.mxu0 0.0
    %438 = vmatpush1.msra.mxu0 0.0
    %439 = vmatprep.subr.mxu0 0.0
    %440 = vmatpush1.msra.mxu0 0.0
    %441 = vmatprep.subr.mxu0 0.0
    %442 = vmatpush1.msra.mxu0 0.0
    %443 = vmatprep.subr.mxu0 0.0
    %444 = vmatpush1.msra.mxu0 0.0
    %445 = vmatprep.subr.mxu0 0.0
    %446 = vmatpush1.msra.mxu0 0.0
    %447 = vmatprep.subr.mxu0 0.0
    %448 = vmatpush1.msra.mxu0 0.0
    %449 = vmatprep.subr.mxu0 0.0
    %450 = vmatpush1.msra.mxu0 0.0
    %451 = vmatprep.subr.mxu0 0.0
    %452 = vmatpush1.msra.mxu0 0.0
    %453 = vmatprep.subr.mxu0 0.0
    %454 = vmatpush1.msra.mxu0 0.0
    %455 = vmatprep.subr.mxu0 0.0
    %456 = vmatpush1.msra.mxu0 0.0
    %457 = vmatprep.subr.mxu0 0.0
    %458 = vmatpush1.msra.mxu0 0.0
    %459 = vmatprep.subr.mxu0 0.0
    %460 = vmatpush1.msra.mxu0 0.0
    %461 = vmatprep.subr.mxu0 0.0
    %462 = vmatpush1.msra.mxu0 0.0
    %463 = vmatprep.subr.mxu0 0.0
    %464 = vmatpush1.msra.mxu0 0.0
    %465 = vmatprep.subr.mxu0 0.0
    %466 = vmatpush1.msra.mxu0 0.0
    %467 = vmatprep.subr.mxu0 0.0
    %468 = vmatpush1.msra.mxu0 0.0
    %469 = vmatprep.subr.mxu0 0.0
    %470 = vmatpush1.msra.mxu0 0.0
    %471 = vmatprep.subr.mxu0 0.0
    %472 = vmatpush1.msra.mxu0 0.0
    %473 = vmatprep.subr.mxu0 0.0
    %474 = vmatpush1.msra.mxu0 0.0
    %475 = vmatprep.subr.mxu0 0.0
    %476 = vmatpush1.msra.mxu0 0.0
    %477 = vmatprep.subr.mxu0 0.0
    %478 = vmatpush1.msra.mxu0 0.0
    %479 = vmatprep.subr.mxu0 0.0
    %480 = vmatpush1.msra.mxu0 0.0
    %481 = vmatprep.subr.mxu0 0.0
    %482 = vmatpush1.msra.mxu0 0.0
    %483 = vmatprep.subr.mxu0 0.0
    %484 = vmatpush1.msra.mxu0 0.0
    %485 = vmatprep.subr.mxu0 0.0
    %486 = vmatpush1.msra.mxu0 0.0
    %487 = vmatprep.mubr.f32.mxu0 0.0
    %488 = vmatmul.mubr.f32.gmra.mrb[0].mxu0 %v350
    %v489 = vpop.f32.mrb[0].mxu0
    %v490 = vadd.f32 0.0, %v489
    %v491 = vpop.f32.mrb[0].mxu0
    %v492 = vadd.f32 0.0, %v491
    %493 = vdwg.mxu0
    %v494 = vmul.f32 %v419, %v419
    %v495 = vmul.f32 %v421, %v421
    %v496 = vmul.f32 %v490, %v490
    %v497 = vmul.f32 %v492, %v492
    %vm498 = vcmask 1040384
    %v499 = vsel %vm498, %v494, 0.0
    %v500 = vsel %vm498, %v495, 0.0
    %v501 = vadd.f32 %v499, %v500
    %v502 = vsel %vm498, %v496, 0.0
    %v503 = vadd.f32 %v501, %v502
    %v504 = vsel %vm498, %v497, 0.0
    %v505 = vadd.f32 %v503, %v504
    %506 = vadd.xlane.f32.xlu0 %v505
    %v507 = vpop.xlane.xlu0 %506
    %v508 = vrsqrt.pop %v507
    %v509 = vmul.f32 %v507, %v508
    %vm510 = vcmp.eq.f32.partialorder %v507, inf
    %v511 = vsel %vm510, %v507, %v509
    %vm512 = vcmp.eq.f32.partialorder %v507, 0.0
    %v513 = vand.u32 %v507, 2147483648
    %v514 = vsel %vm512, %v513, %v511
    %v515 = vmax.f32 %v514, 0.0001
    %v516 = vrcp.pop %v515
    %v517 = vmul.f32 %v419, %v516
    %v518 = vmul.f32 %v421, %v516
    %v519 = vmul.f32 %v490, %v516
    %v520 = vmul.f32 %v492, %v516
    %521 = vmatprep.subr.mxu0 %v10
    %522 = vmatpush1.xpose.msra.mxu0 %v9
    %523 = vmatprep.subr.mxu0 0.0
    %524 = vmatpush1.xpose.msra.mxu0 0.0
    %525 = vmatprep.subr.mxu0 0.0
    %526 = vmatpush1.xpose.msra.mxu0 0.0
    %527 = vmatprep.subr.mxu0 0.0
    %528 = vmatpush1.xpose.msra.mxu0 0.0
    %529 = vmatprep.subr.mxu0 0.0
    %530 = vmatpush1.xpose.msra.mxu0 0.0
    %531 = vmatprep.subr.mxu0 0.0
    %532 = vmatpush1.xpose.msra.mxu0 0.0
    %533 = vmatprep.subr.mxu0 0.0
    %534 = vmatpush1.xpose.msra.mxu0 0.0
    %535 = vmatprep.subr.mxu0 0.0
    %536 = vmatpush1.xpose.msra.mxu0 0.0
    %537 = vmatprep.subr.mxu0 0.0
    %538 = vmatpush1.xpose.msra.mxu0 0.0
    %539 = vmatprep.subr.mxu0 0.0
    %540 = vmatpush1.xpose.msra.mxu0 0.0
    %541 = vmatprep.subr.mxu0 0.0
    %542 = vmatpush1.xpose.msra.mxu0 0.0
    %543 = vmatprep.subr.mxu0 0.0
    %544 = vmatpush1.xpose.msra.mxu0 0.0
    %545 = vmatprep.subr.mxu0 0.0
    %546 = vmatpush1.xpose.msra.mxu0 0.0
    %547 = vmatprep.subr.mxu0 0.0
    %548 = vmatpush1.xpose.msra.mxu0 0.0
    %549 = vmatprep.subr.mxu0 0.0
    %550 = vmatpush1.xpose.msra.mxu0 0.0
    %551 = vmatprep.subr.mxu0 0.0
    %552 = vmatpush1.xpose.msra.mxu0 0.0
    %553 = vmatprep.subr.mxu0 0.0
    %554 = vmatpush1.xpose.msra.mxu0 0.0
    %555 = vmatprep.subr.mxu0 0.0
    %556 = vmatpush1.xpose.msra.mxu0 0.0
    %557 = vmatprep.subr.mxu0 0.0
    %558 = vmatpush1.xpose.msra.mxu0 0.0
    %559 = vmatprep.subr.mxu0 0.0
    %560 = vmatpush1.xpose.msra.mxu0 0.0
    %561 = vmatprep.subr.mxu0 0.0
    %562 = vmatpush1.xpose.msra.mxu0 0.0
    %563 = vmatprep.subr.mxu0 0.0
    %564 = vmatpush1.xpose.msra.mxu0 0.0
    %565 = vmatprep.subr.mxu0 0.0
    %566 = vmatpush1.xpose.msra.mxu0 0.0
    %567 = vmatprep.subr.mxu0 0.0
    %568 = vmatpush1.xpose.msra.mxu0 0.0
    %569 = vmatprep.subr.mxu0 0.0
    %570 = vmatpush1.xpose.msra.mxu0 0.0
    %571 = vmatprep.subr.mxu0 0.0
    %572 = vmatpush1.xpose.msra.mxu0 0.0
    %573 = vmatprep.subr.mxu0 0.0
    %574 = vmatpush1.xpose.msra.mxu0 0.0
    %575 = vmatprep.subr.mxu0 0.0
    %576 = vmatpush1.xpose.msra.mxu0 0.0
    %577 = vmatprep.subr.mxu0 0.0
    %578 = vmatpush1.xpose.msra.mxu0 0.0
    %579 = vmatprep.subr.mxu0 0.0
    %580 = vmatpush1.xpose.msra.mxu0 0.0
    %581 = vmatprep.subr.mxu0 0.0
    %582 = vmatpush1.xpose.msra.mxu0 0.0
    %583 = vmatprep.subr.mxu0 0.0
    %584 = vmatpush1.xpose.msra.mxu0 0.0
    %585 = vmatprep.mubr.f32.mxu0 %v518
    %586 = vmatmul.mubr.f32.gmra.mrb[0].mxu0 %v517
    %v587 = vpop.f32.mrb[0].mxu0
    %v588 = vadd.f32 0.0, %v587
    %v589 = vpop.f32.mrb[0].mxu0
    %590 = vdwg.mxu0
    %591 = vmatprep.subr.mxu0 %v12
    %592 = vmatpush1.xpose.msra.mxu0 %v11
    %593 = vmatprep.subr.mxu0 0.0
    %594 = vmatpush1.xpose.msra.mxu0 0.0
    %595 = vmatprep.subr.mxu0 0.0
    %596 = vmatpush1.xpose.msra.mxu0 0.0
    %597 = vmatprep.subr.mxu0 0.0
    %598 = vmatpush1.xpose.msra.mxu0 0.0
    %599 = vmatprep.subr.mxu0 0.0
    %600 = vmatpush1.xpose.msra.mxu0 0.0
    %601 = vmatprep.subr.mxu0 0.0
    %602 = vmatpush1.xpose.msra.mxu0 0.0
    %603 = vmatprep.subr.mxu0 0.0
    %604 = vmatpush1.xpose.msra.mxu0 0.0
    %605 = vmatprep.subr.mxu0 0.0
    %606 = vmatpush1.xpose.msra.mxu0 0.0
    %607 = vmatprep.subr.mxu0 0.0
    %608 = vmatpush1.xpose.msra.mxu0 0.0
    %609 = vmatprep.subr.mxu0 0.0
    %610 = vmatpush1.xpose.msra.mxu0 0.0
    %611 = vmatprep.subr.mxu0 0.0
    %612 = vmatpush1.xpose.msra.mxu0 0.0
    %613 = vmatprep.subr.mxu0 0.0
    %614 = vmatpush1.xpose.msra.mxu0 0.0
    %615 = vmatprep.subr.mxu0 0.0
    %616 = vmatpush1.xpose.msra.mxu0 0.0
    %617 = vmatprep.subr.mxu0 0.0
    %618 = vmatpush1.xpose.msra.mxu0 0.0
    %619 = vmatprep.subr.mxu0 0.0
    %620 = vmatpush1.xpose.msra.mxu0 0.0
    %621 = vmatprep.subr.mxu0 0.0
    %622 = vmatpush1.xpose.msra.mxu0 0.0
    %623 = vmatprep.subr.mxu0 0.0
    %624 = vmatpush1.xpose.msra.mxu0 0.0
    %625 = vmatprep.subr.mxu0 0.0
    %626 = vmatpush1.xpose.msra.mxu0 0.0
    %627 = vmatprep.subr.mxu0 0.0
    %628 = vmatpush1.xpose.msra.mxu0 0.0
    %629 = vmatprep.subr.mxu0 0.0
    %630 = vmatpush1.xpose.msra.mxu0 0.0
    %631 = vmatprep.subr.mxu0 0.0
    %632 = vmatpush1.xpose.msra.mxu0 0.0
    %633 = vmatprep.subr.mxu0 0.0
    %634 = vmatpush1.xpose.msra.mxu0 0.0
    %635 = vmatprep.subr.mxu0 0.0
    %636 = vmatpush1.xpose.msra.mxu0 0.0
    %637 = vmatprep.subr.mxu0 0.0
    %638 = vmatpush1.xpose.msra.mxu0 0.0
    %639 = vmatprep.subr.mxu0 0.0
    %640 = vmatpush1.xpose.msra.mxu0 0.0
    %641 = vmatprep.subr.mxu0 0.0
    %642 = vmatpush1.xpose.msra.mxu0 0.0
    %643 = vmatprep.subr.mxu0 0.0
    %644 = vmatpush1.xpose.msra.mxu0 0.0
    %645 = vmatprep.subr.mxu0 0.0
    %646 = vmatpush1.xpose.msra.mxu0 0.0
    %647 = vmatprep.subr.mxu0 0.0
    %648 = vmatpush1.xpose.msra.mxu0 0.0
    %649 = vmatprep.subr.mxu0 0.0
    %650 = vmatpush1.xpose.msra.mxu0 0.0
    %651 = vmatprep.subr.mxu0 0.0
    %652 = vmatpush1.xpose.msra.mxu0 0.0
    %653 = vmatprep.subr.mxu0 0.0
    %654 = vmatpush1.xpose.msra.mxu0 0.0
    %655 = vmatprep.mubr.f32.mxu0 %v520
    %656 = vmatmul.mubr.f32.gmra.mrb[0].mxu0 %v519
    %v657 = vpop.f32.mrb[0].mxu0
    %v658 = vadd.f32 %v588, %v657
    %v659 = vpop.f32.mrb[0].mxu0
    %660 = vdwg.mxu0
    %v661 = vmul.f32 %v19, %v658
    %vm662 = vcmask 57344
    %v663 = vsel %vm662, %v661, 0.0
    %664 = vadd.xlane.f32.xlu0 %v663
    %v665 = vpop.xlane.xlu0 %664
    %v666 = vmax.f32 %v665, 1e-12
    %v667 = vrcp.pop %v666
    %v668 = vmul.f32 1.0, %v667
    %vm669 = vcmask 0
    %670 = vst.msk [vmem:[#allocation2] sm:$0x1] %vm669, %v668
    // Predicated region
    $region13: #{init_layer_forward.2} parent=1 // pred_check
      _
    $region14: #{init_layer_forward.2} parent=1 // pred_check_branch
      %672 = sbr.rel (0) target = $region16
    $region15: #{init_layer_forward.2} parent=1 // pred_region
      %s674 = ssub.s32 16, 16
      %675 = vsyncadd [#allocation3], %s674
      %s677 = sshll.u32 [#allocation2], 4
      %s678 = int_to_ptr.vmem [resolvable:$true] %s677
      %680 = dma.vmem_to_hbm [thread:$0]  %s678, 16, %s1, [#allocation3]
    $region16: #{init_layer_forward.2} parent=1 // pred_fallthru
      _
    // Predicated region
    $region17: #{init_layer_forward.2} parent=1 // pred_check
      _
    $region18: #{init_layer_forward.2} parent=1 // pred_check_branch
      %682 = sbr.rel (0) target = $region20
    $region19: #{init_layer_forward.2} parent=1 // pred_region
      %683 = dma.done [#allocation3], 16
    $region20: #{init_layer_forward.2} parent=1 // pred_fallthru
      _
    %684 = vsyncpa [#allocation3], 1

</llo_original>
